<compile_context>
chip_gen: v5e
topology: v5e:2x2
jax: 0.10.0
libtpu: 0.0.40
codegen_flags: <defaults>
</compile_context>

<pallas_src>
import functools

import jax
import jax.numpy as jnp
from jax.experimental import pallas as pl
from jax.experimental.pallas import tpu as pltpu

LANES = 128
SUBLANES = 8
MAX_BLOCK_ROWS = 2048  # 2048 * 128 * 4 B = 1 MiB per f32 input block


def _round_up(x, m):
    return (x + m - 1) // m * m


def _make_kernel(smoothing, total_elems, block_rows, needs_mask):
    smoothing = float(smoothing)

    def kernel(pred_ref, tgt_ref, out_ref):
        x = pred_ref[...].astype(jnp.float32)
        t = tgt_ref[...].astype(jnp.float32) * (1.0 - smoothing) + 0.5 * smoothing

        # numerically stable BCE-with-logits, elementwise (VPU + EUP)
        loss = jnp.maximum(x, 0.0) - x * t + jnp.log1p(jnp.exp(-jnp.abs(x)))

        if needs_mask:
            # zero out the zero-padded tail so it does not bias the sum
            i = pl.program_id(0)
            row = jax.lax.broadcasted_iota(jnp.int32, loss.shape, 0)
            lane = jax.lax.broadcasted_iota(jnp.int32, loss.shape, 1)
            flat = (i * block_rows + row) * LANES + lane
            loss = jnp.where(flat < total_elems, loss, 0.0)

        # Fold the block down to one (8, 128) vreg-shaped partial sum.
        # The reshape only regroups whole (8, 128) tiles, so the reduction is
        # plain vector adds (no XLU cross-lane work in the hot loop).
        partial = loss.reshape(block_rows // SUBLANES, SUBLANES, LANES).sum(axis=0)
        out_ref[...] = partial

    return kernel


@functools.partial(jax.jit, static_argnames=("smoothing",))
def label_smoothing_bce_with_logits(pred, target, smoothing: float = 0.1):
    """Pallas TPU implementation of LabelSmoothingBCEWithLogits.forward."""
    assert pred.shape == target.shape
    total = pred.size

    # Flatten to lane-dense (rows, 128) slabs in the NATIVE dtypes (no upcast).
    pred_flat = pred.reshape(-1)
    tgt_flat = target.reshape(-1)

    rows_needed = pl.cdiv(total, LANES)
    block_rows = min(MAX_BLOCK_ROWS, _round_up(rows_needed, SUBLANES))
    m_padded = _round_up(rows_needed, block_rows)
    pad = m_padded * LANES - total
    if pad:
        pred_flat = jnp.pad(pred_flat, (0, pad))
        tgt_flat = jnp.pad(tgt_flat, (0, pad))

    pred2d = pred_flat.reshape(m_padded, LANES)
    tgt2d = tgt_flat.reshape(m_padded, LANES)

    num_blocks = m_padded // block_rows
    kernel = _make_kernel(smoothing, total, block_rows, needs_mask=pad > 0)

    partials = pl.pallas_call(
        kernel,
        out_shape=jax.ShapeDtypeStruct((num_blocks * SUBLANES, LANES), jnp.float32),
        grid_spec=pltpu.PrefetchScalarGridSpec(
            num_scalar_prefetch=0,
            grid=(num_blocks,),
            in_specs=[
                pl.BlockSpec((block_rows, LANES), lambda i: (i, 0)),
                pl.BlockSpec((block_rows, LANES), lambda i: (i, 0)),
            ],
            out_specs=pl.BlockSpec((SUBLANES, LANES), lambda i: (i, 0)),
        ),
        compiler_params=pltpu.CompilerParams(
            # grid steps are independent -> megacore-shardable (v7x's 2 TCs)
            dimension_semantics=("parallel",),
        ),
    )(pred2d, tgt2d)

    # Tiny final reduce + mean over the TRUE (unpadded) element count.
    return jnp.sum(partials) * (1.0 / total)


def _reference(pred, target, smoothing=0.1):
    x = pred.astype(jnp.float32)
    t = target.astype(jnp.float32) * (1.0 - smoothing) + 0.5 * smoothing
    loss = jnp.maximum(x, 0.0) - x * t + jnp.log1p(jnp.exp(-jnp.abs(x)))
    return jnp.mean(loss)


if __name__ == "__main__":
    key = jax.random.PRNGKey(0)
    k1, k2, k3, k4 = jax.random.split(key, 4)

    # Case 1: module-typical shape, f32 logits, {0,1} float targets.
    shape = (2, 4, 16, 16)
    pred = jax.random.normal(k1, shape, dtype=jnp.float32) * 3.0
    target = jax.random.bernoulli(k2, p=0.5, shape=shape).astype(jnp.float32)
    loss = jax.block_until_ready(
        label_smoothing_bce_with_logits(pred, target, smoothing=0.1))
    ref = _reference(pred, target, 0.1)
    assert jnp.allclose(loss, ref, rtol=1e-5, atol=1e-5), (loss, ref)

    # Case 2: bf16 logits streamed in native dtype, cast to f32 in-kernel.
    pred_bf16 = pred.astype(jnp.bfloat16)
    loss2 = jax.block_until_ready(
        label_smoothing_bce_with_logits(pred_bf16, target, smoothing=0.1))
    ref2 = _reference(pred_bf16, target, 0.1)
    assert jnp.allclose(loss2, ref2, rtol=1e-5, atol=1e-5), (loss2, ref2)

    # Case 3: ragged size (105 elements) exercising the in-kernel tail mask.
    shape3 = (3, 5, 7)
    pred3 = jax.random.normal(k3, shape3, dtype=jnp.float32) * 2.0
    target3 = jax.random.bernoulli(k4, p=0.3, shape=shape3).astype(jnp.float32)
    loss3 = jax.block_until_ready(
        label_smoothing_bce_with_logits(pred3, target3, smoothing=0.1))
    ref3 = _reference(pred3, target3, 0.1)
    assert jnp.allclose(loss3, ref3, rtol=1e-5, atol=1e-5), (loss3, ref3)

    print("KERNEL_OK")
</pallas_src>

<mosaic_0001>
module attributes {stable_mosaic.version = 11 : i64} {
  func.func @kernel(%arg0: i32, %arg1: memref<16x128xf32, #tpu.memory_space<vmem>>, %arg2: memref<16x128xf32, #tpu.memory_space<vmem>>, %arg3: memref<8x128xf32, #tpu.memory_space<vmem>>) attributes {dimension_semantics = [#tpu.dimension_semantics<parallel>], iteration_bounds = array<i64: 1>, scalar_prefetch = 0 : i64, scratch_operands = 0 : i64, tpu.core_type = #tpu.core_type<tc>, window_params = [{transform_indices = @transform_0, window_bounds = array<i64: 16, 128>}, {transform_indices = @transform_1, window_bounds = array<i64: 16, 128>}, {transform_indices = @transform_2, window_bounds = array<i64: 8, 128>}]} {
    %c0 = arith.constant 0 : index
    %c0_0 = arith.constant 0 : index
    %0 = vector.load %arg1[%c0, %c0_0] : memref<16x128xf32, #tpu.memory_space<vmem>>, vector<16x128xf32>
    %c0_1 = arith.constant 0 : index
    %c0_2 = arith.constant 0 : index
    %1 = vector.load %arg2[%c0_1, %c0_2] : memref<16x128xf32, #tpu.memory_space<vmem>>, vector<16x128xf32>
    %cst = arith.constant 0.899999976 : f32
    %2 = vector.broadcast %cst : f32 to vector<16x128xf32>
    %3 = arith.mulf %1, %2 : vector<16x128xf32>
    %cst_3 = arith.constant 5.000000e-02 : f32
    %4 = vector.broadcast %cst_3 : f32 to vector<16x128xf32>
    %5 = arith.addf %3, %4 : vector<16x128xf32>
    %cst_4 = arith.constant 0.000000e+00 : f32
    %6 = vector.broadcast %cst_4 : f32 to vector<16x128xf32>
    %7 = arith.maximumf %0, %6 : vector<16x128xf32>
    %8 = arith.mulf %0, %5 : vector<16x128xf32>
    %9 = arith.subf %7, %8 : vector<16x128xf32>
    %10 = math.absf %0 : vector<16x128xf32>
    %cst_5 = arith.constant 0.000000e+00 : f32
    %11 = vector.broadcast %cst_5 : f32 to vector<16x128xf32>
    %12 = arith.subf %11, %10 : vector<16x128xf32>
    %13 = math.exp %12 : vector<16x128xf32>
    %14 = math.log1p %13 : vector<16x128xf32>
    %15 = arith.addf %9, %14 : vector<16x128xf32>
    %16 = vector.shape_cast %15 : vector<16x128xf32> to vector<2x8x128xf32>
    %cst_6 = arith.constant dense<0.000000e+00> : vector<8x128xf32>
    %17 = vector.multi_reduction <add>, %16, %cst_6 [0] : vector<2x8x128xf32> to vector<8x128xf32>
    %c0_7 = arith.constant 0 : index
    %c0_8 = arith.constant 0 : index
    %18 = vector.load %arg3[%c0_7, %c0_8] : memref<8x128xf32, #tpu.memory_space<vmem>>, vector<8x128xf32>
    tpu.vector_store %arg3[%c0_7, %c0_8], %17 {strides = array<i32>} : memref<8x128xf32, #tpu.memory_space<vmem>>, vector<8x128xf32>,
    return
  }
  func.func @transform_0(%arg0: i32) -> (i32, i32) {
    %c0_i32 = arith.constant 0 : i32
    %c0_i32_0 = arith.constant 0 : i32
    return %arg0, %c0_i32 : i32, i32
  }
  func.func @transform_1(%arg0: i32) -> (i32, i32) {
    %c0_i32 = arith.constant 0 : i32
    %c0_i32_0 = arith.constant 0 : i32
    return %arg0, %c0_i32 : i32, i32
  }
  func.func @transform_2(%arg0: i32) -> (i32, i32) {
    %c0_i32 = arith.constant 0 : i32
    %c0_i32_0 = arith.constant 0 : i32
    return %arg0, %c0_i32 : i32, i32
  }
}

</mosaic_0001>

<llo_original>
// kernel: label_smoothing_bce_with_logits.1
$region0: #{label_smoothing_bce_with_logits.1}
  #allocation0 [shape = 'u32[]', space=smem, size = 0x4, offset = 0x4, fixed_abs, tag = 'smem constant byte address 0x4 - core index']
  #allocation1 [shape = 'u32[72,128]{1,0:T(1,128)}', space=vmem, size = 0x9000, scoped, tag = 'internal scratch']
  %s0 = inlined_call_operand.vmem [shape: f32[16,128], index: 0, kind: input, shape index: {}]
  %s1 = inlined_call_operand.vmem [shape: f32[16,128], index: 1, kind: input, shape index: {}]
  %s2 = inlined_call_operand.vmem [shape: f32[8,128], index: 2, kind: output, shape index: {}]
  %s3 = sld [smem:[#allocation0]]
  $region18: #{label_smoothing_bce_with_logits.1} parent=0
    _
  %s5 = ssub.s32 1, %s3
  %s6 = scalar_select 0, %s5, %s3
  // Predicated region
  $region2: #{label_smoothing_bce_with_logits.1} parent=0 // pred_check
    _
  $region3: #{label_smoothing_bce_with_logits.1} parent=0 // pred_check_branch
    %8 = sbr.rel (0) target = $region5
  $region4: #{label_smoothing_bce_with_logits.1} parent=0 // pred_region
    _
  $region5: #{label_smoothing_bce_with_logits.1} parent=0 // pred_fallthru
    _
  // Predicated region
  $region6: #{label_smoothing_bce_with_logits.1} parent=0 // pred_check
    _
  $region7: #{label_smoothing_bce_with_logits.1} parent=0 // pred_check_branch
    %10 = sbr.rel (0) target = $region9
  $region8: #{label_smoothing_bce_with_logits.1} parent=0 // pred_region
    _
  $region9: #{label_smoothing_bce_with_logits.1} parent=0 // pred_fallthru
    _
  %v11 = vld [vmem:[%s0] sm:$0xff]
  %v12 = vld [vmem:[%s0 + $0x8] sm:$0xff]
  %v13 = vld [vmem:[%s1] sm:$0xff]
  %v14 = vld [vmem:[%s1 + $0x8] sm:$0xff]
  %v15 = vmul.f32 %v13, 0.9
  %v16 = vmul.f32 %v14, 0.9
  %v17 = vadd.f32 %v15, 0.05
  %v18 = vadd.f32 %v16, 0.05
  %v19 = vmax.f32 %v11, 0.0
  %v20 = vmax.f32 %v12, 0.0
  %v21 = vmul.f32 %v11, %v17
  %v22 = vmul.f32 %v12, %v18
  %v23 = vsub.f32 %v19, %v21
  %v24 = vsub.f32 %v20, %v22
  %v25 = vand.u32 2147483647, %v11
  %v26 = vand.u32 2147483647, %v12
  %v27 = vsub.f32 0.0, %v25
  %v28 = vsub.f32 0.0, %v26
  %v29 = vmul.f32 %v27, 1.442695
  %v30 = vpow.pop %v29
  %v31 = vmul.f32 %v28, 1.442695
  %v32 = vpow.pop %v31
  %v33 = vadd.f32 %v30, 1.0
  %v34 = vlog2.pop %v33
  %v35 = vmul.f32 %v34, 0.6931472
  %v36 = vmul.f32 -0.5, %v30
  %v37 = vadd.f32 %v36, 1.0
  %v38 = vmul.f32 %v37, %v30
  %v39 = vand.u32 2147483647, %v30
  %vm40 = vcmp.lt.f32.partialorder %v39, 0.0004427343
  %v41 = vsel %vm40, %v38, %v35
  %v42 = vadd.f32 %v32, 1.0
  %v43 = vlog2.pop %v42
  %v44 = vmul.f32 %v43, 0.6931472
  %v45 = vmul.f32 -0.5, %v32
  %v46 = vadd.f32 %v45, 1.0
  %v47 = vmul.f32 %v46, %v32
  %v48 = vand.u32 2147483647, %v32
  %vm49 = vcmp.lt.f32.partialorder %v48, 0.0004427343
  %v50 = vsel %vm49, %v47, %v44
  %v51 = vadd.f32 %v23, %v41
  %v52 = vadd.f32 %v24, %v50
  %v53 = vadd.f32 %v51, %v52
  %54 = vst [vmem:[%s2] sm:$0xff] %v53
  // Predicated region
  $region10: #{label_smoothing_bce_with_logits.1} parent=0 // pred_check
    _
  $region11: #{label_smoothing_bce_with_logits.1} parent=0 // pred_check_branch
    %56 = sbr.rel (0) target = $region13
  $region12: #{label_smoothing_bce_with_logits.1} parent=0 // pred_region
    _
  $region13: #{label_smoothing_bce_with_logits.1} parent=0 // pred_fallthru
    _
  // Predicated region
  $region14: #{label_smoothing_bce_with_logits.1} parent=0 // pred_check
    _
  $region15: #{label_smoothing_bce_with_logits.1} parent=0 // pred_check_branch
    %58 = sbr.rel (0) target = $region17
  $region16: #{label_smoothing_bce_with_logits.1} parent=0 // pred_region
    _
  $region17: #{label_smoothing_bce_with_logits.1} parent=0 // pred_fallthru
    _

</llo_original>
